<compile_context>
chip_gen: v7x
topology: tpu7x:2x2x1
jax: 0.10.0
libtpu: 0.0.40
codegen_flags: <defaults>
</compile_context>

<pallas_src>
import jax
import jax.numpy as jnp
from jax.experimental import pallas as pl
from jax.experimental.pallas import tpu as pltpu

NEG_BIG = -1e30
LEAKY_SLOPE = 0.01


def _make_gnn_kernel(hidden: int, num_graphs: int):
    H = hidden
    G = num_graphs

    def gnn_kernel(x_ref, a_ref, dinv_ref, p_ref, mask_ref, invcnt_ref,
                   w1l_ref, w1r_ref, b1_ref,
                   w2_ref, b2_ref,
                   w3_ref, b3_ref,
                   wlin_ref, blin_ref, out_ref):
        f32 = jnp.float32

        def lrelu(v):
            return jnp.where(v > 0, v, LEAKY_SLOPE * v)

        x = x_ref[...]            # (N, 1)
        A = a_ref[...]            # (N, N)   A[dst, src]

        # ---- SAGEConv 1 (in_channels=1, aggr='sum') -------------------------
        # (A @ x) * w1l == A @ (x * w1l) since in_channels == 1; the reordered
        # form is a K=1 matmul plus a broadcast VPU mul (H-fold fewer MXU flops).
        ax = jnp.dot(A, x, preferred_element_type=f32)                    # (N, 1)
        h = lrelu(ax * w1l_ref[...] + x * w1r_ref[...] + b1_ref[...])     # (N, H)

        # ---- SAGEConv 2 (aggr='sum'), fused L/R projection -------------------
        agg = jnp.dot(A, h, preferred_element_type=f32)                   # (N, H)
        cat = jnp.concatenate([agg, h], axis=-1)                          # (N, 2H)
        h = lrelu(jnp.dot(cat, w2_ref[...], preferred_element_type=f32)
                  + b2_ref[...])                                          # (N, H)

        # ---- SAGEConv 3 (aggr='mean'), fused L/R projection -------------------
        agg = jnp.dot(A, h, preferred_element_type=f32) * dinv_ref[...]   # (N, H)
        cat = jnp.concatenate([agg, h], axis=-1)                          # (N, 2H)
        h = lrelu(jnp.dot(cat, w3_ref[...], preferred_element_type=f32)
                  + b3_ref[...])                                          # (N, H)

        # ---- global pools ----------------------------------------------------
        sum_pool = jnp.dot(p_ref[...], h, preferred_element_type=f32)     # (G, H)
        mean_pool = sum_pool * invcnt_ref[...]                            # (G, H)

        mask = mask_ref[...]                                              # (N, G)
        maxs = []
        for g in range(G):   # G is small & static
            col = mask[:, g:g + 1]                                        # (N, 1)
            # scalar fill -> single vselect per tile, no (N,H) broadcast materialized
            maxs.append(jnp.max(jnp.where(col > 0, h, NEG_BIG),
                                axis=0, keepdims=True))                   # (1, H)
        max_pool = jnp.concatenate(maxs, axis=0)                          # (G, H)

        # ---- [mean|max|sum] @ wlin_scaled + b  (scales folded into wlin) ------
        feats = jnp.concatenate([mean_pool, max_pool, sum_pool], axis=-1)  # (G, 3H)
        out_ref[...] = (jnp.dot(feats, wlin_ref[...], preferred_element_type=f32)
                        + blin_ref[...])                                   # (G, 1)

    return gnn_kernel


def gnn_forward(x, edge_index, batch, params, num_graphs):
    """x: (N,1) f32, edge_index: (2,E) int32, batch: (N,) int32."""
    N = x.shape[0]
    H = params["w2l"].shape[0]
    G = num_graphs
    f32 = jnp.float32

    src = edge_index[0]
    dst = edge_index[1]
    # dense adjacency: A[dst, src] accumulates edge multiplicity
    A = jnp.zeros((N, N), f32).at[dst, src].add(1.0)
    in_deg = jnp.sum(A, axis=1, keepdims=True)
    deg_inv = 1.0 / jnp.maximum(in_deg, 1.0)                       # (N, 1)

    # one-hot pooling matrix (G, N) and its transpose (N, G) as max-mask
    P = (batch[None, :] == jnp.arange(G, dtype=batch.dtype)[:, None]).astype(f32)
    mask_ng = P.T
    counts = jnp.sum(P, axis=1, keepdims=True)
    inv_count = 1.0 / jnp.maximum(counts, 1.0)                     # (G, 1)

    # --- weight packing (trace-time, on constants) -------------------------
    # fused L/R projections: [agg | h] @ [[w_l],[w_r]]
    W2 = jnp.concatenate([params["w2l"], params["w2r"]], axis=0)   # (2H, H)
    W3 = jnp.concatenate([params["w3l"], params["w3r"]], axis=0)   # (2H, H)
    # fold 0.6/0.3/0.1 pool scales into the final linear weight
    scales = jnp.concatenate([jnp.full((H, 1), 0.6, f32),
                              jnp.full((H, 1), 0.3, f32),
                              jnp.full((H, 1), 0.1, f32)], axis=0)  # (3H, 1)
    wlin_scaled = params["wlin"] * scales                           # (3H, 1)

    kernel = _make_gnn_kernel(H, G)

    # advisory cost hint for the XLA scheduler
    flops = (2 * N * N * 1                       # conv1 A@x
             + 2 * (2 * N * N * H)               # conv2/3 A@h
             + 2 * (2 * N * (2 * H) * H)         # conv2/3 fused projections
             + 2 * G * N * H                     # sum pool
             + 2 * G * 3 * H)                    # final linear
    bytes_accessed = 4 * (N * N + 3 * N + 2 * N * G + 3 * G
                          + 3 * H + 2 * (2 * H * H) + 2 * H + 3 * H + 1)
    cost = pl.CostEstimate(flops=flops, transcendentals=0,
                           bytes_accessed=bytes_accessed)

    # VMEM budget: inputs + intermediates (h/agg/cat headroom), clamped to v7x's 64 MiB
    resident = 4 * (N * N + 3 * N + 2 * N * G + 3 * G
                    + 3 * H + 2 * (2 * H * H) + 2 * H + 3 * H + 1
                    + 6 * N * H)
    vmem_limit = int(min(64 * 1024 * 1024, max(8 * 1024 * 1024, 4 * resident)))

    vmem_spec = pl.BlockSpec(memory_space=pltpu.MemorySpace.VMEM)
    n_in = 15
    out = pl.pallas_call(
        kernel,
        out_shape=jax.ShapeDtypeStruct((G, 1), f32),
        in_specs=[vmem_spec] * n_in,
        out_specs=vmem_spec,
        compiler_params=pltpu.CompilerParams(vmem_limit_bytes=vmem_limit),
        cost_estimate=cost,
    )(x, A, deg_inv, P, mask_ng, inv_count,
      params["w1l"], params["w1r"], params["b1"],
      W2, params["b2"],
      W3, params["b3"],
      wlin_scaled, params["blin"])
    return out


def reference_forward(x, edge_index, batch, params, num_graphs):
    """Pure-JAX reference with the original (unfused) math (for validation)."""
    f32 = jnp.float32
    N = x.shape[0]
    G = num_graphs
    src, dst = edge_index[0], edge_index[1]
    A = jnp.zeros((N, N), f32).at[dst, src].add(1.0)
    deg_inv = 1.0 / jnp.maximum(jnp.sum(A, axis=1, keepdims=True), 1.0)

    def lrelu(v):
        return jnp.where(v > 0, v, LEAKY_SLOPE * v)

    h = lrelu(A @ (x * params["w1l"]) + x * params["w1r"] + params["b1"])
    h = lrelu((A @ h) @ params["w2l"] + h @ params["w2r"] + params["b2"])
    h = lrelu(((A @ h) * deg_inv) @ params["w3l"] + h @ params["w3r"] + params["b3"])

    P = (batch[None, :] == jnp.arange(G, dtype=batch.dtype)[:, None]).astype(f32)
    sum_pool = P @ h
    mean_pool = sum_pool / jnp.maximum(jnp.sum(P, axis=1, keepdims=True), 1.0)
    max_pool = jnp.stack(
        [jnp.max(jnp.where((P[g][:, None] > 0), h, NEG_BIG), axis=0) for g in range(G)],
        axis=0)
    feats = jnp.concatenate([0.6 * mean_pool, 0.3 * max_pool, 0.1 * sum_pool], axis=1)
    return feats @ params["wlin"] + params["blin"]


def init_params(key, hidden):
    H = hidden
    ks = jax.random.split(key, 9)
    s = 0.1
    p = {
        "w1l": jax.random.normal(ks[0], (1, H), jnp.float32) * s,
        "w1r": jax.random.normal(ks[1], (1, H), jnp.float32) * s,
        "b1": jax.random.normal(ks[2], (1, H), jnp.float32) * s,
        "w2l": jax.random.normal(ks[3], (H, H), jnp.float32) * s,
        "w2r": jax.random.normal(ks[4], (H, H), jnp.float32) * s,
        "b2": jnp.zeros((1, H), jnp.float32),
        "w3l": jax.random.normal(ks[5], (H, H), jnp.float32) * s,
        "w3r": jax.random.normal(ks[6], (H, H), jnp.float32) * s,
        "b3": jnp.zeros((1, H), jnp.float32),
        "wlin": jax.random.normal(ks[7], (3 * H, 1), jnp.float32) * s,
        "blin": jax.random.normal(ks[8], (1, 1), jnp.float32) * s,
    }
    return p


if __name__ == "__main__":
    key = jax.random.PRNGKey(0)
    k_x, k_e1, k_e2, k_e3, k_e4, k_p = jax.random.split(key, 6)

    N = 16          # nodes total
    G = 2           # graphs in batch (8 nodes each)
    H = 32          # hidden channels (h_channels[0])
    E_per = 20      # edges per graph

    # node features (N, 1) — SAGEConv1 has in_channels=1
    x = jax.random.normal(k_x, (N, 1), jnp.float32)

    # edges: within-graph random edges, PyG convention edge_index=[src; dst]
    src0 = jax.random.randint(k_e1, (E_per,), 0, 8)
    dst0 = jax.random.randint(k_e2, (E_per,), 0, 8)
    src1 = jax.random.randint(k_e3, (E_per,), 0, 8) + 8
    dst1 = jax.random.randint(k_e4, (E_per,), 0, 8) + 8
    edge_index = jnp.stack([jnp.concatenate([src0, src1]),
                            jnp.concatenate([dst0, dst1])]).astype(jnp.int32)

    batch = jnp.concatenate([jnp.zeros((8,), jnp.int32),
                             jnp.ones((8,), jnp.int32)])

    params = init_params(k_p, H)

    out = gnn_forward(x, edge_index, batch, params, G)
    out = jax.block_until_ready(out)

    ref = reference_forward(x, edge_index, batch, params, G)
    assert out.shape == (G, 1)
    assert jnp.allclose(out, ref, rtol=1e-4, atol=1e-4), (out, ref)

    print("KERNEL_OK")
</pallas_src>

<mosaic_0001>
module attributes {stable_mosaic.version = 11 : i64} {
  func.func @gnn_kernel(%arg0: memref<16x1xf32, #tpu.memory_space<vmem>>, %arg1: memref<16x16xf32, #tpu.memory_space<vmem>>, %arg2: memref<16x1xf32, #tpu.memory_space<vmem>>, %arg3: memref<2x16xf32, #tpu.memory_space<vmem>>, %arg4: memref<16x2xf32, #tpu.memory_space<vmem>>, %arg5: memref<2x1xf32, #tpu.memory_space<vmem>>, %arg6: memref<1x32xf32, #tpu.memory_space<vmem>>, %arg7: memref<1x32xf32, #tpu.memory_space<vmem>>, %arg8: memref<1x32xf32, #tpu.memory_space<vmem>>, %arg9: memref<64x32xf32, #tpu.memory_space<vmem>>, %arg10: memref<1x32xf32, #tpu.memory_space<vmem>>, %arg11: memref<64x32xf32, #tpu.memory_space<vmem>>, %arg12: memref<1x32xf32, #tpu.memory_space<vmem>>, %arg13: memref<96x1xf32, #tpu.memory_space<vmem>>, %arg14: memref<1x1xf32, #tpu.memory_space<vmem>>, %arg15: memref<2x1xf32, #tpu.memory_space<vmem>>) attributes {dimension_semantics = [], scalar_prefetch = 0 : i64, scratch_operands = 0 : i64, tpu.core_type = #tpu.core_type<tc>} {
    %c0 = arith.constant 0 : index
    %c0_0 = arith.constant 0 : index
    %0 = vector.load %arg0[%c0, %c0_0] : memref<16x1xf32, #tpu.memory_space<vmem>>, vector<16x1xf32>
    %c0_1 = arith.constant 0 : index
    %c0_2 = arith.constant 0 : index
    %1 = vector.load %arg1[%c0_1, %c0_2] : memref<16x16xf32, #tpu.memory_space<vmem>>, vector<16x16xf32>
    %cst = arith.constant dense<0.000000e+00> : vector<16x1xf32>
    %2 = tpu.matmul %1, %0, %cst {dimension_numbers = #tpu.dot_dimension_numbers<[1], [0], [0], [1], [0, 0, 1, 1], [], []>} : vector<16x16xf32>, vector<16x1xf32>, vector<16x1xf32> -> vector<16x1xf32>
    %c0_3 = arith.constant 0 : index
    %c0_4 = arith.constant 0 : index
    %3 = vector.load %arg6[%c0_3, %c0_4] : memref<1x32xf32, #tpu.memory_space<vmem>>, vector<1x32xf32>
    %4 = vector.broadcast %2 : vector<16x1xf32> to vector<16x32xf32>
    %5 = vector.broadcast %3 : vector<1x32xf32> to vector<16x32xf32>
    %6 = arith.mulf %4, %5 : vector<16x32xf32>
    %c0_5 = arith.constant 0 : index
    %c0_6 = arith.constant 0 : index
    %7 = vector.load %arg7[%c0_5, %c0_6] : memref<1x32xf32, #tpu.memory_space<vmem>>, vector<1x32xf32>
    %8 = vector.broadcast %0 : vector<16x1xf32> to vector<16x32xf32>
    %9 = vector.broadcast %7 : vector<1x32xf32> to vector<16x32xf32>
    %10 = arith.mulf %8, %9 : vector<16x32xf32>
    %11 = arith.addf %6, %10 : vector<16x32xf32>
    %c0_7 = arith.constant 0 : index
    %c0_8 = arith.constant 0 : index
    %12 = vector.load %arg8[%c0_7, %c0_8] : memref<1x32xf32, #tpu.memory_space<vmem>>, vector<1x32xf32>
    %13 = vector.broadcast %12 : vector<1x32xf32> to vector<16x32xf32>
    %14 = arith.addf %11, %13 : vector<16x32xf32>
    %cst_9 = arith.constant 0.000000e+00 : f32
    %15 = vector.broadcast %cst_9 : f32 to vector<16x32xf32>
    %16 = arith.cmpf ogt, %14, %15 : vector<16x32xf32>
    %cst_10 = arith.constant 0.00999999977 : f32
    %17 = vector.broadcast %cst_10 : f32 to vector<16x32xf32>
    %18 = arith.mulf %17, %14 : vector<16x32xf32>
    %19 = arith.select %16, %14, %18 : vector<16x32xi1>, vector<16x32xf32>
    %cst_11 = arith.constant dense<0.000000e+00> : vector<16x32xf32>
    %20 = tpu.matmul %1, %19, %cst_11 {dimension_numbers = #tpu.dot_dimension_numbers<[1], [0], [0], [1], [0, 0, 1, 1], [], []>} : vector<16x16xf32>, vector<16x32xf32>, vector<16x32xf32> -> vector<16x32xf32>
    %21 = tpu.concatenate %20, %19 in 1 : vector<16x32xf32>, vector<16x32xf32> -> vector<16x64xf32>
    %c0_12 = arith.constant 0 : index
    %c0_13 = arith.constant 0 : index
    %22 = vector.load %arg9[%c0_12, %c0_13] : memref<64x32xf32, #tpu.memory_space<vmem>>, vector<64x32xf32>
    %cst_14 = arith.constant dense<0.000000e+00> : vector<16x32xf32>
    %23 = tpu.matmul %21, %22, %cst_14 {dimension_numbers = #tpu.dot_dimension_numbers<[1], [0], [0], [1], [0, 0, 1, 1], [], []>} : vector<16x64xf32>, vector<64x32xf32>, vector<16x32xf32> -> vector<16x32xf32>
    %c0_15 = arith.constant 0 : index
    %c0_16 = arith.constant 0 : index
    %24 = vector.load %arg10[%c0_15, %c0_16] : memref<1x32xf32, #tpu.memory_space<vmem>>, vector<1x32xf32>
    %25 = vector.broadcast %24 : vector<1x32xf32> to vector<16x32xf32>
    %26 = arith.addf %23, %25 : vector<16x32xf32>
    %cst_17 = arith.constant 0.000000e+00 : f32
    %27 = vector.broadcast %cst_17 : f32 to vector<16x32xf32>
    %28 = arith.cmpf ogt, %26, %27 : vector<16x32xf32>
    %cst_18 = arith.constant 0.00999999977 : f32
    %29 = vector.broadcast %cst_18 : f32 to vector<16x32xf32>
    %30 = arith.mulf %29, %26 : vector<16x32xf32>
    %31 = arith.select %28, %26, %30 : vector<16x32xi1>, vector<16x32xf32>
    %cst_19 = arith.constant dense<0.000000e+00> : vector<16x32xf32>
    %32 = tpu.matmul %1, %31, %cst_19 {dimension_numbers = #tpu.dot_dimension_numbers<[1], [0], [0], [1], [0, 0, 1, 1], [], []>} : vector<16x16xf32>, vector<16x32xf32>, vector<16x32xf32> -> vector<16x32xf32>
    %c0_20 = arith.constant 0 : index
    %c0_21 = arith.constant 0 : index
    %33 = vector.load %arg2[%c0_20, %c0_21] : memref<16x1xf32, #tpu.memory_space<vmem>>, vector<16x1xf32>
    %34 = vector.broadcast %33 : vector<16x1xf32> to vector<16x32xf32>
    %35 = arith.mulf %32, %34 : vector<16x32xf32>
    %36 = tpu.concatenate %35, %31 in 1 : vector<16x32xf32>, vector<16x32xf32> -> vector<16x64xf32>
    %c0_22 = arith.constant 0 : index
    %c0_23 = arith.constant 0 : index
    %37 = vector.load %arg11[%c0_22, %c0_23] : memref<64x32xf32, #tpu.memory_space<vmem>>, vector<64x32xf32>
    %cst_24 = arith.constant dense<0.000000e+00> : vector<16x32xf32>
    %38 = tpu.matmul %36, %37, %cst_24 {dimension_numbers = #tpu.dot_dimension_numbers<[1], [0], [0], [1], [0, 0, 1, 1], [], []>} : vector<16x64xf32>, vector<64x32xf32>, vector<16x32xf32> -> vector<16x32xf32>
    %c0_25 = arith.constant 0 : index
    %c0_26 = arith.constant 0 : index
    %39 = vector.load %arg12[%c0_25, %c0_26] : memref<1x32xf32, #tpu.memory_space<vmem>>, vector<1x32xf32>
    %40 = vector.broadcast %39 : vector<1x32xf32> to vector<16x32xf32>
    %41 = arith.addf %38, %40 : vector<16x32xf32>
    %cst_27 = arith.constant 0.000000e+00 : f32
    %42 = vector.broadcast %cst_27 : f32 to vector<16x32xf32>
    %43 = arith.cmpf ogt, %41, %42 : vector<16x32xf32>
    %cst_28 = arith.constant 0.00999999977 : f32
    %44 = vector.broadcast %cst_28 : f32 to vector<16x32xf32>
    %45 = arith.mulf %44, %41 : vector<16x32xf32>
    %46 = arith.select %43, %41, %45 : vector<16x32xi1>, vector<16x32xf32>
    %c0_29 = arith.constant 0 : index
    %c0_30 = arith.constant 0 : index
    %47 = vector.load %arg3[%c0_29, %c0_30] : memref<2x16xf32, #tpu.memory_space<vmem>>, vector<2x16xf32>
    %cst_31 = arith.constant dense<0.000000e+00> : vector<2x32xf32>
    %48 = tpu.matmul %47, %46, %cst_31 {dimension_numbers = #tpu.dot_dimension_numbers<[1], [0], [0], [1], [0, 0, 1, 1], [], []>} : vector<2x16xf32>, vector<16x32xf32>, vector<2x32xf32> -> vector<2x32xf32>
    %c0_32 = arith.constant 0 : index
    %c0_33 = arith.constant 0 : index
    %49 = vector.load %arg5[%c0_32, %c0_33] : memref<2x1xf32, #tpu.memory_space<vmem>>, vector<2x1xf32>
    %50 = vector.broadcast %49 : vector<2x1xf32> to vector<2x32xf32>
    %51 = arith.mulf %48, %50 : vector<2x32xf32>
    %c0_34 = arith.constant 0 : index
    %c0_35 = arith.constant 0 : index
    %52 = vector.load %arg4[%c0_34, %c0_35] : memref<16x2xf32, #tpu.memory_space<vmem>>, vector<16x2xf32>
    %53 = vector.extract_strided_slice %52 {offsets = [0, 0], sizes = [16, 1], strides = [1, 1]} : vector<16x2xf32> to vector<16x1xf32>
    %cst_36 = arith.constant 0.000000e+00 : f32
    %54 = vector.broadcast %cst_36 : f32 to vector<16x1xf32>
    %55 = arith.cmpf ogt, %53, %54 : vector<16x1xf32>
    %cst_37 = arith.constant -1.000000e+30 : f32
    %56 = vector.shape_cast %55 : vector<16x1xi1> to vector<16x1xi1>
    %57 = vector.broadcast %56 : vector<16x1xi1> to vector<16x32xi1>
    %58 = vector.broadcast %cst_37 : f32 to vector<16x32xf32>
    %59 = arith.select %57, %46, %58 : vector<16x32xi1>, vector<16x32xf32>
    %cst_38 = arith.constant dense<0xFF800000> : vector<32xf32>
    %60 = vector.multi_reduction <maximumf>, %59, %cst_38 [0] : vector<16x32xf32> to vector<32xf32>
    %61 = vector.shape_cast %60 : vector<32xf32> to vector<1x32xf32>
    %62 = vector.extract_strided_slice %52 {offsets = [0, 1], sizes = [16, 1], strides = [1, 1]} : vector<16x2xf32> to vector<16x1xf32>
    %cst_39 = arith.constant 0.000000e+00 : f32
    %63 = vector.broadcast %cst_39 : f32 to vector<16x1xf32>
    %64 = arith.cmpf ogt, %62, %63 : vector<16x1xf32>
    %cst_40 = arith.constant -1.000000e+30 : f32
    %65 = vector.shape_cast %64 : vector<16x1xi1> to vector<16x1xi1>
    %66 = vector.broadcast %65 : vector<16x1xi1> to vector<16x32xi1>
    %67 = vector.broadcast %cst_40 : f32 to vector<16x32xf32>
    %68 = arith.select %66, %46, %67 : vector<16x32xi1>, vector<16x32xf32>
    %cst_41 = arith.constant dense<0xFF800000> : vector<32xf32>
    %69 = vector.multi_reduction <maximumf>, %68, %cst_41 [0] : vector<16x32xf32> to vector<32xf32>
    %70 = vector.shape_cast %69 : vector<32xf32> to vector<1x32xf32>
    %71 = tpu.concatenate %61, %70 in 0 : vector<1x32xf32>, vector<1x32xf32> -> vector<2x32xf32>
    %72 = tpu.concatenate %51, %71, %48 in 1 : vector<2x32xf32>, vector<2x32xf32>, vector<2x32xf32> -> vector<2x96xf32>
    %c0_42 = arith.constant 0 : index
    %c0_43 = arith.constant 0 : index
    %73 = vector.load %arg13[%c0_42, %c0_43] : memref<96x1xf32, #tpu.memory_space<vmem>>, vector<96x1xf32>
    %cst_44 = arith.constant dense<0.000000e+00> : vector<2x1xf32>
    %74 = tpu.matmul %72, %73, %cst_44 {dimension_numbers = #tpu.dot_dimension_numbers<[1], [0], [0], [1], [0, 0, 1, 1], [], []>} : vector<2x96xf32>, vector<96x1xf32>, vector<2x1xf32> -> vector<2x1xf32>
    %c0_45 = arith.constant 0 : index
    %c0_46 = arith.constant 0 : index
    %75 = vector.load %arg14[%c0_45, %c0_46] : memref<1x1xf32, #tpu.memory_space<vmem>>, vector<1x1xf32>
    %76 = vector.broadcast %75 : vector<1x1xf32> to vector<2x1xf32>
    %77 = arith.addf %74, %76 : vector<2x1xf32>
    %c0_47 = arith.constant 0 : index
    %c0_48 = arith.constant 0 : index
    %78 = vector.load %arg15[%c0_47, %c0_48] : memref<2x1xf32, #tpu.memory_space<vmem>>, vector<2x1xf32>
    tpu.vector_store %arg15[%c0_47, %c0_48], %77 {strides = array<i32>} : memref<2x1xf32, #tpu.memory_space<vmem>>, vector<2x1xf32>,
    return
  }
}

</mosaic_0001>

<llo_original>
// kernel: tpu_custom_call.1
$region0: #{tpu_custom_call.1}
  #allocation0 [shape = 'u32[]', space=smem, size = 0x4, offset = 0x4, fixed_abs, tag = 'smem constant byte address 0x4 - core index']
  #allocation1 [shape = 'u32[144,128]{1,0:T(1,128)}', space=vmem, size = 0x12000, scoped, tag = 'internal scratch']
  #allocation2 [shape = 'f32[1,1]{1,0:T(1,128)S(1)}', space=vmem, size = 0x200, scoped, tag = 'scoped memory for tpu_custom_call.1']
  %s0 = inlined_call_operand.vmem [shape: f32[16,1], index: 0, kind: input, shape index: {}]
  %s1 = inlined_call_operand.vmem [shape: f32[16,16], index: 1, kind: input, shape index: {}]
  %s2 = inlined_call_operand.vmem [shape: f32[16,1], index: 2, kind: input, shape index: {}]
  %s3 = inlined_call_operand.vmem [shape: f32[2,16], index: 3, kind: input, shape index: {}]
  %s4 = inlined_call_operand.vmem [shape: f32[16,2], index: 4, kind: input, shape index: {}]
  %s5 = inlined_call_operand.vmem [shape: f32[2,1], index: 5, kind: input, shape index: {}]
  %s6 = inlined_call_operand.vmem [shape: f32[1,32], index: 6, kind: input, shape index: {}]
  %s7 = inlined_call_operand.vmem [shape: f32[1,32], index: 7, kind: input, shape index: {}]
  %s8 = inlined_call_operand.vmem [shape: f32[1,32], index: 8, kind: input, shape index: {}]
  %s9 = inlined_call_operand.vmem [shape: f32[64,32], index: 9, kind: input, shape index: {}]
  %s10 = inlined_call_operand.vmem [shape: f32[1,32], index: 10, kind: input, shape index: {}]
  %s11 = inlined_call_operand.vmem [shape: f32[64,32], index: 11, kind: input, shape index: {}]
  %s12 = inlined_call_operand.vmem [shape: f32[1,32], index: 12, kind: input, shape index: {}]
  %s13 = inlined_call_operand.vmem [shape: f32[96,1], index: 13, kind: input, shape index: {}]
  %s14 = inlined_call_operand.<no memory space> [shape: f32[1,1], index: 14, kind: input, shape index: {}]
  %s15 = inlined_call_operand.vmem [shape: f32[2,1], index: 15, kind: output, shape index: {}]
  %s16 = sld [smem:[#allocation0]]
  $region70: #{tpu_custom_call.1} parent=0
    _
  %s18 = ssub.s32 1, %s16
  %s19 = scalar_select 0, %s18, %s16
  %v20 = vstv %s14
  %21 = vst [vmem:[#allocation2] sm:$0x1] %v20
  // Predicated region
  $region2: #{tpu_custom_call.1} parent=0 // pred_check
    _
  $region3: #{tpu_custom_call.1} parent=0 // pred_check_branch
    %23 = sbr.rel (0) target = $region5
  $region4: #{tpu_custom_call.1} parent=0 // pred_region
    _
  $region5: #{tpu_custom_call.1} parent=0 // pred_fallthru
    _
  // Predicated region
  $region6: #{tpu_custom_call.1} parent=0 // pred_check
    _
  $region7: #{tpu_custom_call.1} parent=0 // pred_check_branch
    %25 = sbr.rel (0) target = $region9
  $region8: #{tpu_custom_call.1} parent=0 // pred_region
    _
  $region9: #{tpu_custom_call.1} parent=0 // pred_fallthru
    _
  // Predicated region
  $region10: #{tpu_custom_call.1} parent=0 // pred_check
    _
  $region11: #{tpu_custom_call.1} parent=0 // pred_check_branch
    %27 = sbr.rel (0) target = $region13
  $region12: #{tpu_custom_call.1} parent=0 // pred_region
    _
  $region13: #{tpu_custom_call.1} parent=0 // pred_fallthru
    _
  // Predicated region
  $region14: #{tpu_custom_call.1} parent=0 // pred_check
    _
  $region15: #{tpu_custom_call.1} parent=0 // pred_check_branch
    %29 = sbr.rel (0) target = $region17
  $region16: #{tpu_custom_call.1} parent=0 // pred_region
    _
  $region17: #{tpu_custom_call.1} parent=0 // pred_fallthru
    _
  // Predicated region
  $region18: #{tpu_custom_call.1} parent=0 // pred_check
    _
  $region19: #{tpu_custom_call.1} parent=0 // pred_check_branch
    %31 = sbr.rel (0) target = $region21
  $region20: #{tpu_custom_call.1} parent=0 // pred_region
    _
  $region21: #{tpu_custom_call.1} parent=0 // pred_fallthru
    _
  // Predicated region
  $region22: #{tpu_custom_call.1} parent=0 // pred_check
    _
  $region23: #{tpu_custom_call.1} parent=0 // pred_check_branch
    %33 = sbr.rel (0) target = $region25
  $region24: #{tpu_custom_call.1} parent=0 // pred_region
    _
  $region25: #{tpu_custom_call.1} parent=0 // pred_fallthru
    _
  // Predicated region
  $region26: #{tpu_custom_call.1} parent=0 // pred_check
    _
  $region27: #{tpu_custom_call.1} parent=0 // pred_check_branch
    %35 = sbr.rel (0) target = $region29
  $region28: #{tpu_custom_call.1} parent=0 // pred_region
    _
  $region29: #{tpu_custom_call.1} parent=0 // pred_fallthru
    _
  // Predicated region
  $region30: #{tpu_custom_call.1} parent=0 // pred_check
    _
  $region31: #{tpu_custom_call.1} parent=0 // pred_check_branch
    %37 = sbr.rel (0) target = $region33
  $region32: #{tpu_custom_call.1} parent=0 // pred_region
    _
  $region33: #{tpu_custom_call.1} parent=0 // pred_fallthru
    _
  // Predicated region
  $region34: #{tpu_custom_call.1} parent=0 // pred_check
    _
  $region35: #{tpu_custom_call.1} parent=0 // pred_check_branch
    %39 = sbr.rel (0) target = $region37
  $region36: #{tpu_custom_call.1} parent=0 // pred_region
    _
  $region37: #{tpu_custom_call.1} parent=0 // pred_fallthru
    _
  // Predicated region
  $region38: #{tpu_custom_call.1} parent=0 // pred_check
    _
  $region39: #{tpu_custom_call.1} parent=0 // pred_check_branch
    %41 = sbr.rel (0) target = $region41
  $region40: #{tpu_custom_call.1} parent=0 // pred_region
    _
  $region41: #{tpu_custom_call.1} parent=0 // pred_fallthru
    _
  // Predicated region
  $region42: #{tpu_custom_call.1} parent=0 // pred_check
    _
  $region43: #{tpu_custom_call.1} parent=0 // pred_check_branch
    %43 = sbr.rel (0) target = $region45
  $region44: #{tpu_custom_call.1} parent=0 // pred_region
    _
  $region45: #{tpu_custom_call.1} parent=0 // pred_fallthru
    _
  // Predicated region
  $region46: #{tpu_custom_call.1} parent=0 // pred_check
    _
  $region47: #{tpu_custom_call.1} parent=0 // pred_check_branch
    %45 = sbr.rel (0) target = $region49
  $region48: #{tpu_custom_call.1} parent=0 // pred_region
    _
  $region49: #{tpu_custom_call.1} parent=0 // pred_fallthru
    _
  // Predicated region
  $region50: #{tpu_custom_call.1} parent=0 // pred_check
    _
  $region51: #{tpu_custom_call.1} parent=0 // pred_check_branch
    %47 = sbr.rel (0) target = $region53
  $region52: #{tpu_custom_call.1} parent=0 // pred_region
    _
  $region53: #{tpu_custom_call.1} parent=0 // pred_fallthru
    _
  // Predicated region
  $region54: #{tpu_custom_call.1} parent=0 // pred_check
    _
  $region55: #{tpu_custom_call.1} parent=0 // pred_check_branch
    %49 = sbr.rel (0) target = $region57
  $region56: #{tpu_custom_call.1} parent=0 // pred_region
    _
  $region57: #{tpu_custom_call.1} parent=0 // pred_fallthru
    _
  // Predicated region
  $region58: #{tpu_custom_call.1} parent=0 // pred_check
    _
  $region59: #{tpu_custom_call.1} parent=0 // pred_check_branch
    %51 = sbr.rel (0) target = $region61
  $region60: #{tpu_custom_call.1} parent=0 // pred_region
    _
  $region61: #{tpu_custom_call.1} parent=0 // pred_fallthru
    _
  %v52 = vld [vmem:[%s0] sm:$0xff]
  %v53 = vld [vmem:[%s0 + $0x8] sm:$0xff]
  %v54 = vld [vmem:[%s1] sm:$0xff]
  %v55 = vld [vmem:[%s1 + $0x8] sm:$0xff]
  %vm56 = vcmask 130048
  %v58 = vsel %vm56, %v54, 0
  %v61 = vsel %vm56, %v55, 0
  %63 = vmatprep.subr.mxu0 0.0
  %64 = vmatpush1.msra.mxu0 %v52
  %65 = vmatprep.subr.mxu0 0.0
  %66 = vmatpush1.msra.mxu0 %v53
  %67 = vmatprep.subr.mxu0 0.0
  %68 = vmatpush1.msra.mxu0 0.0
  %69 = vmatprep.subr.mxu0 0.0
  %70 = vmatpush1.msra.mxu0 0.0
  %71 = vmatprep.subr.mxu0 0.0
  %72 = vmatpush1.msra.mxu0 0.0
  %73 = vmatprep.subr.mxu0 0.0
  %74 = vmatpush1.msra.mxu0 0.0
  %75 = vmatprep.subr.mxu0 0.0
  %76 = vmatpush1.msra.mxu0 0.0
  %77 = vmatprep.subr.mxu0 0.0
  %78 = vmatpush1.msra.mxu0 0.0
  %79 = vmatprep.subr.mxu0 0.0
  %80 = vmatpush1.msra.mxu0 0.0
  %81 = vmatprep.subr.mxu0 0.0
  %82 = vmatpush1.msra.mxu0 0.0
  %83 = vmatprep.subr.mxu0 0.0
  %84 = vmatpush1.msra.mxu0 0.0
  %85 = vmatprep.subr.mxu0 0.0
  %86 = vmatpush1.msra.mxu0 0.0
  %87 = vmatprep.subr.mxu0 0.0
  %88 = vmatpush1.msra.mxu0 0.0
  %89 = vmatprep.subr.mxu0 0.0
  %90 = vmatpush1.msra.mxu0 0.0
  %91 = vmatprep.subr.mxu0 0.0
  %92 = vmatpush1.msra.mxu0 0.0
  %93 = vmatprep.subr.mxu0 0.0
  %94 = vmatpush1.msra.mxu0 0.0
  %95 = vmatprep.subr.mxu0 0.0
  %96 = vmatpush1.msra.mxu0 0.0
  %97 = vmatprep.subr.mxu0 0.0
  %98 = vmatpush1.msra.mxu0 0.0
  %99 = vmatprep.subr.mxu0 0.0
  %100 = vmatpush1.msra.mxu0 0.0
  %101 = vmatprep.subr.mxu0 0.0
  %102 = vmatpush1.msra.mxu0 0.0
  %103 = vmatprep.subr.mxu0 0.0
  %104 = vmatpush1.msra.mxu0 0.0
  %105 = vmatprep.subr.mxu0 0.0
  %106 = vmatpush1.msra.mxu0 0.0
  %107 = vmatprep.subr.mxu0 0.0
  %108 = vmatpush1.msra.mxu0 0.0
  %109 = vmatprep.subr.mxu0 0.0
  %110 = vmatpush1.msra.mxu0 0.0
  %111 = vmatprep.subr.mxu0 0.0
  %112 = vmatpush1.msra.mxu0 0.0
  %113 = vmatprep.subr.mxu0 0.0
  %114 = vmatpush1.msra.mxu0 0.0
  %115 = vmatprep.subr.mxu0 0.0
  %116 = vmatpush1.msra.mxu0 0.0
  %117 = vmatprep.subr.mxu0 0.0
  %118 = vmatpush1.msra.mxu0 0.0
  %119 = vmatprep.subr.mxu0 0.0
  %120 = vmatpush1.msra.mxu0 0.0
  %121 = vmatprep.subr.mxu0 0.0
  %122 = vmatpush1.msra.mxu0 0.0
  %123 = vmatprep.subr.mxu0 0.0
  %124 = vmatpush1.msra.mxu0 0.0
  %125 = vmatprep.subr.mxu0 0.0
  %126 = vmatpush1.msra.mxu0 0.0
  %127 = vmatprep.mubr.f32.mxu0 0.0
  %128 = vmatmul.mubr.f32.gmra.mrb[0].mxu0 %v58
  %v129 = vpop.f32.mrb[0].mxu0
  %v130 = vadd.f32 0.0, %v129
  %v131 = vpop.f32.mrb[0].mxu0
  %132 = vmatprep.mubr.f32.mxu0 0.0
  %133 = vmatmul.mubr.f32.gmra.mrb[0].mxu0 %v61
  %v134 = vpop.f32.mrb[0].mxu0
  %v135 = vadd.f32 0.0, %v134
  %v136 = vpop.f32.mrb[0].mxu0
  %137 = vdwg.mxu0
  %v138 = vld [vmem:[%s6] sm:$0x1]
  %140 = vset.pattern.permute.xlu0 0
  %141 = vperm.xlu0 %140, %v130
  %v142 = vpop.permute.xlu0 %141
  %145 = vset.pattern.permute.xlu0 0
  %146 = vperm.xlu0 %145, %v135
  %v147 = vpop.permute.xlu0 %146
  %v150 = vlaneseq
  %v151 = vshrl.u32 %v150, 7
  %v152 = vsub.s32 0, %v151
  %v153 = vrot.slane %v138, %v152
  %v155 = vmul.f32 %v142, %v153
  %v156 = vmul.f32 %v147, %v153
  %v157 = vld [vmem:[%s7] sm:$0x1]
  %159 = vset.pattern.permute.xlu0 0
  %160 = vperm.xlu0 %159, %v52
  %v161 = vpop.permute.xlu0 %160
  %164 = vset.pattern.permute.xlu0 0
  %165 = vperm.xlu0 %164, %v53
  %v166 = vpop.permute.xlu0 %165
  %v169 = vlaneseq
  %v170 = vshrl.u32 %v169, 7
  %v171 = vsub.s32 0, %v170
  %v172 = vrot.slane %v157, %v171
  %v174 = vmul.f32 %v161, %v172
  %v175 = vmul.f32 %v166, %v172
  %v176 = vadd.f32 %v155, %v174
  %v177 = vadd.f32 %v156, %v175
  %v178 = vld [vmem:[%s8] sm:$0x1]
  %v180 = vlaneseq
  %v181 = vshrl.u32 %v180, 7
  %v182 = vsub.s32 0, %v181
  %v183 = vrot.slane %v178, %v182
  %v185 = vadd.f32 %v176, %v183
  %v186 = vadd.f32 %v177, %v183
  %vm187 = vcmp.gt.f32.partialorder %v185, 0.0
  %vm188 = vcmp.gt.f32.partialorder %v186, 0.0
  %v189 = vmul.f32 %v185, 0.01
  %v190 = vmul.f32 %v186, 0.01
  %v191 = vsel %vm187, %v185, %v189
  %v192 = vsel %vm188, %v186, %v190
  %193 = vmatprep.subr.mxu0 0.0
  %194 = vmatpush1.msra.mxu0 %v191
  %195 = vmatprep.subr.mxu0 0.0
  %196 = vmatpush1.msra.mxu0 %v192
  %197 = vmatprep.subr.mxu0 0.0
  %198 = vmatpush1.msra.mxu0 0.0
  %199 = vmatprep.subr.mxu0 0.0
  %200 = vmatpush1.msra.mxu0 0.0
  %201 = vmatprep.subr.mxu0 0.0
  %202 = vmatpush1.msra.mxu0 0.0
  %203 = vmatprep.subr.mxu0 0.0
  %204 = vmatpush1.msra.mxu0 0.0
  %205 = vmatprep.subr.mxu0 0.0
  %206 = vmatpush1.msra.mxu0 0.0
  %207 = vmatprep.subr.mxu0 0.0
  %208 = vmatpush1.msra.mxu0 0.0
  %209 = vmatprep.subr.mxu0 0.0
  %210 = vmatpush1.msra.mxu0 0.0
  %211 = vmatprep.subr.mxu0 0.0
  %212 = vmatpush1.msra.mxu0 0.0
  %213 = vmatprep.subr.mxu0 0.0
  %214 = vmatpush1.msra.mxu0 0.0
  %215 = vmatprep.subr.mxu0 0.0
  %216 = vmatpush1.msra.mxu0 0.0
  %217 = vmatprep.subr.mxu0 0.0
  %218 = vmatpush1.msra.mxu0 0.0
  %219 = vmatprep.subr.mxu0 0.0
  %220 = vmatpush1.msra.mxu0 0.0
  %221 = vmatprep.subr.mxu0 0.0
  %222 = vmatpush1.msra.mxu0 0.0
  %223 = vmatprep.subr.mxu0 0.0
  %224 = vmatpush1.msra.mxu0 0.0
  %225 = vmatprep.subr.mxu0 0.0
  %226 = vmatpush1.msra.mxu0 0.0
  %227 = vmatprep.subr.mxu0 0.0
  %228 = vmatpush1.msra.mxu0 0.0
  %229 = vmatprep.subr.mxu0 0.0
  %230 = vmatpush1.msra.mxu0 0.0
  %231 = vmatprep.subr.mxu0 0.0
  %232 = vmatpush1.msra.mxu0 0.0
  %233 = vmatprep.subr.mxu0 0.0
  %234 = vmatpush1.msra.mxu0 0.0
  %235 = vmatprep.subr.mxu0 0.0
  %236 = vmatpush1.msra.mxu0 0.0
  %237 = vmatprep.subr.mxu0 0.0
  %238 = vmatpush1.msra.mxu0 0.0
  %239 = vmatprep.subr.mxu0 0.0
  %240 = vmatpush1.msra.mxu0 0.0
  %241 = vmatprep.subr.mxu0 0.0
  %242 = vmatpush1.msra.mxu0 0.0
  %243 = vmatprep.subr.mxu0 0.0
  %244 = vmatpush1.msra.mxu0 0.0
  %245 = vmatprep.subr.mxu0 0.0
  %246 = vmatpush1.msra.mxu0 0.0
  %247 = vmatprep.subr.mxu0 0.0
  %248 = vmatpush1.msra.mxu0 0.0
  %249 = vmatprep.subr.mxu0 0.0
  %250 = vmatpush1.msra.mxu0 0.0
  %251 = vmatprep.subr.mxu0 0.0
  %252 = vmatpush1.msra.mxu0 0.0
  %253 = vmatprep.subr.mxu0 0.0
  %254 = vmatpush1.msra.mxu0 0.0
  %255 = vmatprep.subr.mxu0 0.0
  %256 = vmatpush1.msra.mxu0 0.0
  %257 = vmatprep.mubr.f32.mxu0 0.0
  %258 = vmatmul.mubr.f32.gmra.mrb[0].mxu0 %v58
  %v259 = vpop.f32.mrb[0].mxu0
  %v260 = vadd.f32 0.0, %v259
  %v261 = vpop.f32.mrb[0].mxu0
  %262 = vmatprep.mubr.f32.mxu0 0.0
  %263 = vmatmul.mubr.f32.gmra.mrb[0].mxu0 %v61
  %v264 = vpop.f32.mrb[0].mxu0
  %v265 = vadd.f32 0.0, %v264
  %v266 = vpop.f32.mrb[0].mxu0
  %267 = vdwg.mxu0
  %270 = vrot.lane.b32.xlu0 %v191, 32
  %v271 = vpop.permute.xlu0 %270
  %272 = vrot.lane.b32.xlu0 %v192, 32
  %v273 = vpop.permute.xlu0 %272
  %vm276 = vcmask 261120
  %v277 = vsel %vm276, %v260, %v271
  %v278 = vsel %vm276, %v265, %v273
  %v279 = vld [vmem:[%s9] sm:$0xff]
  %v280 = vld [vmem:[%s9 + $0x8] sm:$0xff]
  %v281 = vld [vmem:[%s9 + $0x10] sm:$0xff]
  %v282 = vld [vmem:[%s9 + $0x18] sm:$0xff]
  %v283 = vld [vmem:[%s9 + $0x20] sm:$0xff]
  %v284 = vld [vmem:[%s9 + $0x28] sm:$0xff]
  %v285 = vld [vmem:[%s9 + $0x30] sm:$0xff]
  %v286 = vld [vmem:[%s9 + $0x38] sm:$0xff]
  %v287 = vld [vmem:[%s10] sm:$0x1]
  %v289 = vlaneseq
  %v290 = vshrl.u32 %v289, 7
  %v291 = vsub.s32 0, %v290
  %v292 = vrot.slane %v287, %v291
  %vm294 = vcmask 523264
  %v296 = vsel %vm294, %v277, 0
  %v299 = vsel %vm294, %v278, 0
  %301 = vmatprep.subr.mxu0 0.0
  %302 = vmatpush1.msra.mxu0 %v279
  %303 = vmatprep.subr.mxu0 0.0
  %304 = vmatpush1.msra.mxu0 %v280
  %305 = vmatprep.subr.mxu0 0.0
  %306 = vmatpush1.msra.mxu0 %v281
  %307 = vmatprep.subr.mxu0 0.0
  %308 = vmatpush1.msra.mxu0 %v282
  %309 = vmatprep.subr.mxu0 0.0
  %310 = vmatpush1.msra.mxu0 %v283
  %311 = vmatprep.subr.mxu0 0.0
  %312 = vmatpush1.msra.mxu0 %v284
  %313 = vmatprep.subr.mxu0 0.0
  %314 = vmatpush1.msra.mxu0 %v285
  %315 = vmatprep.subr.mxu0 0.0
  %316 = vmatpush1.msra.mxu0 %v286
  %317 = vmatprep.subr.mxu0 0.0
  %318 = vmatpush1.msra.mxu0 0.0
  %319 = vmatprep.subr.mxu0 0.0
  %320 = vmatpush1.msra.mxu0 0.0
  %321 = vmatprep.subr.mxu0 0.0
  %322 = vmatpush1.msra.mxu0 0.0
  %323 = vmatprep.subr.mxu0 0.0
  %324 = vmatpush1.msra.mxu0 0.0
  %325 = vmatprep.subr.mxu0 0.0
  %326 = vmatpush1.msra.mxu0 0.0
  %327 = vmatprep.subr.mxu0 0.0
  %328 = vmatpush1.msra.mxu0 0.0
  %329 = vmatprep.subr.mxu0 0.0
  %330 = vmatpush1.msra.mxu0 0.0
  %331 = vmatprep.subr.mxu0 0.0
  %332 = vmatpush1.msra.mxu0 0.0
  %333 = vmatprep.subr.mxu0 0.0
  %334 = vmatpush1.msra.mxu0 0.0
  %335 = vmatprep.subr.mxu0 0.0
  %336 = vmatpush1.msra.mxu0 0.0
  %337 = vmatprep.subr.mxu0 0.0
  %338 = vmatpush1.msra.mxu0 0.0
  %339 = vmatprep.subr.mxu0 0.0
  %340 = vmatpush1.msra.mxu0 0.0
  %341 = vmatprep.subr.mxu0 0.0
  %342 = vmatpush1.msra.mxu0 0.0
  %343 = vmatprep.subr.mxu0 0.0
  %344 = vmatpush1.msra.mxu0 0.0
  %345 = vmatprep.subr.mxu0 0.0
  %346 = vmatpush1.msra.mxu0 0.0
  %347 = vmatprep.subr.mxu0 0.0
  %348 = vmatpush1.msra.mxu0 0.0
  %349 = vmatprep.subr.mxu0 0.0
  %350 = vmatpush1.msra.mxu0 0.0
  %351 = vmatprep.subr.mxu0 0.0
  %352 = vmatpush1.msra.mxu0 0.0
  %353 = vmatprep.subr.mxu0 0.0
  %354 = vmatpush1.msra.mxu0 0.0
  %355 = vmatprep.subr.mxu0 0.0
  %356 = vmatpush1.msra.mxu0 0.0
  %357 = vmatprep.subr.mxu0 0.0
  %358 = vmatpush1.msra.mxu0 0.0
  %359 = vmatprep.subr.mxu0 0.0
  %360 = vmatpush1.msra.mxu0 0.0
  %361 = vmatprep.subr.mxu0 0.0
  %362 = vmatpush1.msra.mxu0 0.0
  %363 = vmatprep.subr.mxu0 0.0
  %364 = vmatpush1.msra.mxu0 0.0
  %365 = vmatprep.mubr.f32.mxu0 0.0
  %366 = vmatmul.mubr.f32.gmra.mrb[0].mxu0 %v296
  %v367 = vpop.f32.mrb[0].mxu0
  %v368 = vadd.f32 %v292, %v367
  %v369 = vpop.f32.mrb[0].mxu0
  %370 = vmatprep.mubr.f32.mxu0 0.0
  %371 = vmatmul.mubr.f32.gmra.mrb[0].mxu0 %v299
  %v372 = vpop.f32.mrb[0].mxu0
  %v373 = vadd.f32 %v292, %v372
  %v374 = vpop.f32.mrb[0].mxu0
  %375 = vdwg.mxu0
  %vm376 = vcmp.gt.f32.partialorder %v368, 0.0
  %vm377 = vcmp.gt.f32.partialorder %v373, 0.0
  %v378 = vmul.f32 %v368, 0.01
  %v379 = vmul.f32 %v373, 0.01
  %v380 = vsel %vm376, %v368, %v378
  %v381 = vsel %vm377, %v373, %v379
  %382 = vmatprep.subr.mxu0 0.0
  %383 = vmatpush1.msra.mxu0 %v380
  %384 = vmatprep.subr.mxu0 0.0
  %385 = vmatpush1.msra.mxu0 %v381
  %386 = vmatprep.subr.mxu0 0.0
  %387 = vmatpush1.msra.mxu0 0.0
  %388 = vmatprep.subr.mxu0 0.0
  %389 = vmatpush1.msra.mxu0 0.0
  %390 = vmatprep.subr.mxu0 0.0
  %391 = vmatpush1.msra.mxu0 0.0
  %392 = vmatprep.subr.mxu0 0.0
  %393 = vmatpush1.msra.mxu0 0.0
  %394 = vmatprep.subr.mxu0 0.0
  %395 = vmatpush1.msra.mxu0 0.0
  %396 = vmatprep.subr.mxu0 0.0
  %397 = vmatpush1.msra.mxu0 0.0
  %398 = vmatprep.subr.mxu0 0.0
  %399 = vmatpush1.msra.mxu0 0.0
  %400 = vmatprep.subr.mxu0 0.0
  %401 = vmatpush1.msra.mxu0 0.0
  %402 = vmatprep.subr.mxu0 0.0
  %403 = vmatpush1.msra.mxu0 0.0
  %404 = vmatprep.subr.mxu0 0.0
  %405 = vmatpush1.msra.mxu0 0.0
  %406 = vmatprep.subr.mxu0 0.0
  %407 = vmatpush1.msra.mxu0 0.0
  %408 = vmatprep.subr.mxu0 0.0
  %409 = vmatpush1.msra.mxu0 0.0
  %410 = vmatprep.subr.mxu0 0.0
  %411 = vmatpush1.msra.mxu0 0.0
  %412 = vmatprep.subr.mxu0 0.0
  %413 = vmatpush1.msra.mxu0 0.0
  %414 = vmatprep.subr.mxu0 0.0
  %415 = vmatpush1.msra.mxu0 0.0
  %416 = vmatprep.subr.mxu0 0.0
  %417 = vmatpush1.msra.mxu0 0.0
  %418 = vmatprep.subr.mxu0 0.0
  %419 = vmatpush1.msra.mxu0 0.0
  %420 = vmatprep.subr.mxu0 0.0
  %421 = vmatpush1.msra.mxu0 0.0
  %422 = vmatprep.subr.mxu0 0.0
  %423 = vmatpush1.msra.mxu0 0.0
  %424 = vmatprep.subr.mxu0 0.0
  %425 = vmatpush1.msra.mxu0 0.0
  %426 = vmatprep.subr.mxu0 0.0
  %427 = vmatpush1.msra.mxu0 0.0
  %428 = vmatprep.subr.mxu0 0.0
  %429 = vmatpush1.msra.mxu0 0.0
  %430 = vmatprep.subr.mxu0 0.0
  %431 = vmatpush1.msra.mxu0 0.0
  %432 = vmatprep.subr.mxu0 0.0
  %433 = vmatpush1.msra.mxu0 0.0
  %434 = vmatprep.subr.mxu0 0.0
  %435 = vmatpush1.msra.mxu0 0.0
  %436 = vmatprep.subr.mxu0 0.0
  %437 = vmatpush1.msra.mxu0 0.0
  %438 = vmatprep.subr.mxu0 0.0
  %439 = vmatpush1.msra.mxu0 0.0
  %440 = vmatprep.subr.mxu0 0.0
  %441 = vmatpush1.msra.mxu0 0.0
  %442 = vmatprep.subr.mxu0 0.0
  %443 = vmatpush1.msra.mxu0 0.0
  %444 = vmatprep.subr.mxu0 0.0
  %445 = vmatpush1.msra.mxu0 0.0
  %446 = vmatprep.mubr.f32.mxu0 0.0
  %447 = vmatmul.mubr.f32.gmra.mrb[0].mxu0 %v58
  %v448 = vpop.f32.mrb[0].mxu0
  %v449 = vadd.f32 0.0, %v448
  %v450 = vpop.f32.mrb[0].mxu0
  %451 = vmatprep.mubr.f32.mxu0 0.0
  %452 = vmatmul.mubr.f32.gmra.mrb[0].mxu0 %v61
  %v453 = vpop.f32.mrb[0].mxu0
  %v454 = vadd.f32 0.0, %v453
  %v455 = vpop.f32.mrb[0].mxu0
  %456 = vdwg.mxu0
  %v457 = vld [vmem:[%s2] sm:$0xff]
  %v458 = vld [vmem:[%s2 + $0x8] sm:$0xff]
  %460 = vset.pattern.permute.xlu0 0
  %461 = vperm.xlu0 %460, %v457
  %v462 = vpop.permute.xlu0 %461
  %465 = vset.pattern.permute.xlu0 0
  %466 = vperm.xlu0 %465, %v458
  %v467 = vpop.permute.xlu0 %466
  %v469 = vmul.f32 %v449, %v462
  %v470 = vmul.f32 %v454, %v467
  %473 = vrot.lane.b32.xlu0 %v380, 32
  %v474 = vpop.permute.xlu0 %473
  %475 = vrot.lane.b32.xlu0 %v381, 32
  %v476 = vpop.permute.xlu0 %475
  %v479 = vsel %vm276, %v469, %v474
  %v480 = vsel %vm276, %v470, %v476
  %v481 = vld [vmem:[%s11] sm:$0xff]
  %v482 = vld [vmem:[%s11 + $0x8] sm:$0xff]
  %v483 = vld [vmem:[%s11 + $0x10] sm:$0xff]
  %v484 = vld [vmem:[%s11 + $0x18] sm:$0xff]
  %v485 = vld [vmem:[%s11 + $0x20] sm:$0xff]
  %v486 = vld [vmem:[%s11 + $0x28] sm:$0xff]
  %v487 = vld [vmem:[%s11 + $0x30] sm:$0xff]
  %v488 = vld [vmem:[%s11 + $0x38] sm:$0xff]
  %v489 = vld [vmem:[%s12] sm:$0x1]
  %v491 = vlaneseq
  %v492 = vshrl.u32 %v491, 7
  %v493 = vsub.s32 0, %v492
  %v494 = vrot.slane %v489, %v493
  %v497 = vsel %vm294, %v479, 0
  %v500 = vsel %vm294, %v480, 0
  %502 = vmatprep.subr.mxu0 0.0
  %503 = vmatpush1.msra.mxu0 %v481
  %504 = vmatprep.subr.mxu0 0.0
  %505 = vmatpush1.msra.mxu0 %v482
  %506 = vmatprep.subr.mxu0 0.0
  %507 = vmatpush1.msra.mxu0 %v483
  %508 = vmatprep.subr.mxu0 0.0
  %509 = vmatpush1.msra.mxu0 %v484
  %510 = vmatprep.subr.mxu0 0.0
  %511 = vmatpush1.msra.mxu0 %v485
  %512 = vmatprep.subr.mxu0 0.0
  %513 = vmatpush1.msra.mxu0 %v486
  %514 = vmatprep.subr.mxu0 0.0
  %515 = vmatpush1.msra.mxu0 %v487
  %516 = vmatprep.subr.mxu0 0.0
  %517 = vmatpush1.msra.mxu0 %v488
  %518 = vmatprep.subr.mxu0 0.0
  %519 = vmatpush1.msra.mxu0 0.0
  %520 = vmatprep.subr.mxu0 0.0
  %521 = vmatpush1.msra.mxu0 0.0
  %522 = vmatprep.subr.mxu0 0.0
  %523 = vmatpush1.msra.mxu0 0.0
  %524 = vmatprep.subr.mxu0 0.0
  %525 = vmatpush1.msra.mxu0 0.0
  %526 = vmatprep.subr.mxu0 0.0
  %527 = vmatpush1.msra.mxu0 0.0
  %528 = vmatprep.subr.mxu0 0.0
  %529 = vmatpush1.msra.mxu0 0.0
  %530 = vmatprep.subr.mxu0 0.0
  %531 = vmatpush1.msra.mxu0 0.0
  %532 = vmatprep.subr.mxu0 0.0
  %533 = vmatpush1.msra.mxu0 0.0
  %534 = vmatprep.subr.mxu0 0.0
  %535 = vmatpush1.msra.mxu0 0.0
  %536 = vmatprep.subr.mxu0 0.0
  %537 = vmatpush1.msra.mxu0 0.0
  %538 = vmatprep.subr.mxu0 0.0
  %539 = vmatpush1.msra.mxu0 0.0
  %540 = vmatprep.subr.mxu0 0.0
  %541 = vmatpush1.msra.mxu0 0.0
  %542 = vmatprep.subr.mxu0 0.0
  %543 = vmatpush1.msra.mxu0 0.0
  %544 = vmatprep.subr.mxu0 0.0
  %545 = vmatpush1.msra.mxu0 0.0
  %546 = vmatprep.subr.mxu0 0.0
  %547 = vmatpush1.msra.mxu0 0.0
  %548 = vmatprep.subr.mxu0 0.0
  %549 = vmatpush1.msra.mxu0 0.0
  %550 = vmatprep.subr.mxu0 0.0
  %551 = vmatpush1.msra.mxu0 0.0
  %552 = vmatprep.subr.mxu0 0.0
  %553 = vmatpush1.msra.mxu0 0.0
  %554 = vmatprep.subr.mxu0 0.0
  %555 = vmatpush1.msra.mxu0 0.0
  %556 = vmatprep.subr.mxu0 0.0
  %557 = vmatpush1.msra.mxu0 0.0
  %558 = vmatprep.subr.mxu0 0.0
  %559 = vmatpush1.msra.mxu0 0.0
  %560 = vmatprep.subr.mxu0 0.0
  %561 = vmatpush1.msra.mxu0 0.0
  %562 = vmatprep.subr.mxu0 0.0
  %563 = vmatpush1.msra.mxu0 0.0
  %564 = vmatprep.subr.mxu0 0.0
  %565 = vmatpush1.msra.mxu0 0.0
  %566 = vmatprep.mubr.f32.mxu0 0.0
  %567 = vmatmul.mubr.f32.gmra.mrb[0].mxu0 %v497
  %v568 = vpop.f32.mrb[0].mxu0
  %v569 = vadd.f32 %v494, %v568
  %v570 = vpop.f32.mrb[0].mxu0
  %571 = vmatprep.mubr.f32.mxu0 0.0
  %572 = vmatmul.mubr.f32.gmra.mrb[0].mxu0 %v500
  %v573 = vpop.f32.mrb[0].mxu0
  %v574 = vadd.f32 %v494, %v573
  %v575 = vpop.f32.mrb[0].mxu0
  %576 = vdwg.mxu0
  %vm577 = vcmp.gt.f32.partialorder %v569, 0.0
  %vm578 = vcmp.gt.f32.partialorder %v574, 0.0
  %v579 = vmul.f32 %v569, 0.01
  %v580 = vmul.f32 %v574, 0.01
  %v581 = vsel %vm577, %v569, %v579
  %v582 = vsel %vm578, %v574, %v580
  %v583 = vld [vmem:[%s3] sm:$0x3]
  %v585 = vsel %vm56, %v583, 0
  %587 = vmatprep.subr.mxu0 0.0
  %588 = vmatpush1.msra.mxu0 %v581
  %589 = vmatprep.subr.mxu0 0.0
  %590 = vmatpush1.msra.mxu0 %v582
  %591 = vmatprep.subr.mxu0 0.0
  %592 = vmatpush1.msra.mxu0 0.0
  %593 = vmatprep.subr.mxu0 0.0
  %594 = vmatpush1.msra.mxu0 0.0
  %595 = vmatprep.subr.mxu0 0.0
  %596 = vmatpush1.msra.mxu0 0.0
  %597 = vmatprep.subr.mxu0 0.0
  %598 = vmatpush1.msra.mxu0 0.0
  %599 = vmatprep.subr.mxu0 0.0
  %600 = vmatpush1.msra.mxu0 0.0
  %601 = vmatprep.subr.mxu0 0.0
  %602 = vmatpush1.msra.mxu0 0.0
  %603 = vmatprep.subr.mxu0 0.0
  %604 = vmatpush1.msra.mxu0 0.0
  %605 = vmatprep.subr.mxu0 0.0
  %606 = vmatpush1.msra.mxu0 0.0
  %607 = vmatprep.subr.mxu0 0.0
  %608 = vmatpush1.msra.mxu0 0.0
  %609 = vmatprep.subr.mxu0 0.0
  %610 = vmatpush1.msra.mxu0 0.0
  %611 = vmatprep.subr.mxu0 0.0
  %612 = vmatpush1.msra.mxu0 0.0
  %613 = vmatprep.subr.mxu0 0.0
  %614 = vmatpush1.msra.mxu0 0.0
  %615 = vmatprep.subr.mxu0 0.0
  %616 = vmatpush1.msra.mxu0 0.0
  %617 = vmatprep.subr.mxu0 0.0
  %618 = vmatpush1.msra.mxu0 0.0
  %619 = vmatprep.subr.mxu0 0.0
  %620 = vmatpush1.msra.mxu0 0.0
  %621 = vmatprep.subr.mxu0 0.0
  %622 = vmatpush1.msra.mxu0 0.0
  %623 = vmatprep.subr.mxu0 0.0
  %624 = vmatpush1.msra.mxu0 0.0
  %625 = vmatprep.subr.mxu0 0.0
  %626 = vmatpush1.msra.mxu0 0.0
  %627 = vmatprep.subr.mxu0 0.0
  %628 = vmatpush1.msra.mxu0 0.0
  %629 = vmatprep.subr.mxu0 0.0
  %630 = vmatpush1.msra.mxu0 0.0
  %631 = vmatprep.subr.mxu0 0.0
  %632 = vmatpush1.msra.mxu0 0.0
  %633 = vmatprep.subr.mxu0 0.0
  %634 = vmatpush1.msra.mxu0 0.0
  %635 = vmatprep.subr.mxu0 0.0
  %636 = vmatpush1.msra.mxu0 0.0
  %637 = vmatprep.subr.mxu0 0.0
  %638 = vmatpush1.msra.mxu0 0.0
  %639 = vmatprep.subr.mxu0 0.0
  %640 = vmatpush1.msra.mxu0 0.0
  %641 = vmatprep.subr.mxu0 0.0
  %642 = vmatpush1.msra.mxu0 0.0
  %643 = vmatprep.subr.mxu0 0.0
  %644 = vmatpush1.msra.mxu0 0.0
  %645 = vmatprep.subr.mxu0 0.0
  %646 = vmatpush1.msra.mxu0 0.0
  %647 = vmatprep.subr.mxu0 0.0
  %648 = vmatpush1.msra.mxu0 0.0
  %649 = vmatprep.subr.mxu0 0.0
  %650 = vmatpush1.msra.mxu0 0.0
  %651 = vmatprep.mubr.f32.mxu0 0.0
  %652 = vmatmul.mubr.f32.gmra.mrb[0].mxu0 %v585
  %v653 = vpop.f32.mrb[0].mxu0
  %v654 = vadd.f32 0.0, %v653
  %v655 = vpop.f32.mrb[0].mxu0
  %656 = vdwg.mxu0
  %v657 = vld [vmem:[%s5] sm:$0x3]
  %659 = vset.pattern.permute.xlu0 0
  %660 = vperm.xlu0 %659, %v657
  %v661 = vpop.permute.xlu0 %660
  %v663 = vmul.f32 %v654, %v661
  %v664 = vld [vmem:[%s4] sm:$0xff]
  %v665 = vld [vmem:[%s4 + $0x8] sm:$0xff]
  %vm666 = vcmp.gt.f32.partialorder %v664, 0.0
  %vm667 = vcmp.gt.f32.partialorder %v665, 0.0
  %v668 = vsel %vm666, 1, 0
  %v669 = vsel %vm667, 1, 0
  %670 = vset.pattern.permute.xlu0 0
  %671 = vperm.xlu0 %670, %v668
  %v672 = vpop.permute.xlu0 %671
  %673 = vset.pattern.permute.xlu0 0
  %674 = vperm.xlu0 %673, %v669
  %v675 = vpop.permute.xlu0 %674
  %vm676 = vcmp.eq.s32.totalorder %v672, 1
  %vm677 = vcmp.eq.s32.totalorder %v675, 1
  %v678 = vsel %vm676, %v581, -1e+30
  %v679 = vsel %vm677, %v582, -1e+30
  %v680 = vsel %vm276, %v678, -inf
  %v681 = vsel %vm276, %v679, -inf
  %v682 = vmax.f32 %v680, %v681
  %v683 = vrot.slane %v682, 4
  %v684 = vmax.f32 %v682, %v683
  %v685 = vrot.slane %v684, 2
  %v686 = vmax.f32 %v684, %v685
  %v687 = vrot.slane %v686, 1
  %v688 = vmax.f32 %v686, %v687
  %689 = vset.pattern.permute.xlu0 1
  %690 = vperm.xlu0 %689, %v668
  %v691 = vpop.permute.xlu0 %690
  %692 = vset.pattern.permute.xlu0 1
  %693 = vperm.xlu0 %692, %v669
  %v694 = vpop.permute.xlu0 %693
  %vm695 = vcmp.eq.s32.totalorder %v691, 1
  %vm696 = vcmp.eq.s32.totalorder %v694, 1
  %v697 = vsel %vm695, %v581, -1e+30
  %v698 = vsel %vm696, %v582, -1e+30
  %v699 = vsel %vm276, %v697, -inf
  %v700 = vsel %vm276, %v698, -inf
  %v701 = vmax.f32 %v699, %v700
  %v702 = vrot.slane %v701, 4
  %v703 = vmax.f32 %v701, %v702
  %v704 = vrot.slane %v703, 2
  %v705 = vmax.f32 %v703, %v704
  %v706 = vrot.slane %v705, 1
  %v707 = vmax.f32 %v705, %v706
  %vm708 = vcmask 1040384
  %v709 = vsel %vm708, %v688, %v707
  %711 = vrot.lane.b32.xlu0 %v709, 32
  %v712 = vpop.permute.xlu0 %711
  %715 = vrot.lane.b32.xlu0 %v654, 64
  %v716 = vpop.permute.xlu0 %715
  %v718 = vsel %vm276, %v663, %v712
  %v719 = vsel %vm294, %v718, %v716
  %v720 = vld [vmem:[%s13] sm:$0xff]
  %v721 = vld [vmem:[%s13 + $0x8] sm:$0xff]
  %v722 = vld [vmem:[%s13 + $0x10] sm:$0xff]
  %v723 = vld [vmem:[%s13 + $0x18] sm:$0xff]
  %v724 = vld [vmem:[%s13 + $0x20] sm:$0xff]
  %v725 = vld [vmem:[%s13 + $0x28] sm:$0xff]
  %v726 = vld [vmem:[%s13 + $0x30] sm:$0xff]
  %v727 = vld [vmem:[%s13 + $0x38] sm:$0xff]
  %v728 = vld [vmem:[%s13 + $0x40] sm:$0xff]
  %v729 = vld [vmem:[%s13 + $0x48] sm:$0xff]
  %v730 = vld [vmem:[%s13 + $0x50] sm:$0xff]
  %v731 = vld [vmem:[%s13 + $0x58] sm:$0xff]
  %v732 = vld [vmem:[#allocation2] sm:$0x1]
  %v734 = vlaneseq
  %v735 = vshrl.u32 %v734, 7
  %v736 = vsub.s32 0, %v735
  %v737 = vrot.slane %v732, %v736
  %vm739 = vcmask 785408
  %v741 = vsel %vm739, %v719, 0
  %743 = vmatprep.subr.mxu0 0.0
  %744 = vmatpush1.msra.mxu0 %v720
  %745 = vmatprep.subr.mxu0 0.0
  %746 = vmatpush1.msra.mxu0 %v721
  %747 = vmatprep.subr.mxu0 0.0
  %748 = vmatpush1.msra.mxu0 %v722
  %749 = vmatprep.subr.mxu0 0.0
  %750 = vmatpush1.msra.mxu0 %v723
  %751 = vmatprep.subr.mxu0 0.0
  %752 = vmatpush1.msra.mxu0 %v724
  %753 = vmatprep.subr.mxu0 0.0
  %754 = vmatpush1.msra.mxu0 %v725
  %755 = vmatprep.subr.mxu0 0.0
  %756 = vmatpush1.msra.mxu0 %v726
  %757 = vmatprep.subr.mxu0 0.0
  %758 = vmatpush1.msra.mxu0 %v727
  %759 = vmatprep.subr.mxu0 0.0
  %760 = vmatpush1.msra.mxu0 %v728
  %761 = vmatprep.subr.mxu0 0.0
  %762 = vmatpush1.msra.mxu0 %v729
  %763 = vmatprep.subr.mxu0 0.0
  %764 = vmatpush1.msra.mxu0 %v730
  %765 = vmatprep.subr.mxu0 0.0
  %766 = vmatpush1.msra.mxu0 %v731
  %767 = vmatprep.subr.mxu0 0.0
  %768 = vmatpush1.msra.mxu0 0.0
  %769 = vmatprep.subr.mxu0 0.0
  %770 = vmatpush1.msra.mxu0 0.0
  %771 = vmatprep.subr.mxu0 0.0
  %772 = vmatpush1.msra.mxu0 0.0
  %773 = vmatprep.subr.mxu0 0.0
  %774 = vmatpush1.msra.mxu0 0.0
  %775 = vmatprep.subr.mxu0 0.0
  %776 = vmatpush1.msra.mxu0 0.0
  %777 = vmatprep.subr.mxu0 0.0
  %778 = vmatpush1.msra.mxu0 0.0
  %779 = vmatprep.subr.mxu0 0.0
  %780 = vmatpush1.msra.mxu0 0.0
  %781 = vmatprep.subr.mxu0 0.0
  %782 = vmatpush1.msra.mxu0 0.0
  %783 = vmatprep.subr.mxu0 0.0
  %784 = vmatpush1.msra.mxu0 0.0
  %785 = vmatprep.subr.mxu0 0.0
  %786 = vmatpush1.msra.mxu0 0.0
  %787 = vmatprep.subr.mxu0 0.0
  %788 = vmatpush1.msra.mxu0 0.0
  %789 = vmatprep.subr.mxu0 0.0
  %790 = vmatpush1.msra.mxu0 0.0
  %791 = vmatprep.subr.mxu0 0.0
  %792 = vmatpush1.msra.mxu0 0.0
  %793 = vmatprep.subr.mxu0 0.0
  %794 = vmatpush1.msra.mxu0 0.0
  %795 = vmatprep.subr.mxu0 0.0
  %796 = vmatpush1.msra.mxu0 0.0
  %797 = vmatprep.subr.mxu0 0.0
  %798 = vmatpush1.msra.mxu0 0.0
  %799 = vmatprep.subr.mxu0 0.0
  %800 = vmatpush1.msra.mxu0 0.0
  %801 = vmatprep.subr.mxu0 0.0
  %802 = vmatpush1.msra.mxu0 0.0
  %803 = vmatprep.subr.mxu0 0.0
  %804 = vmatpush1.msra.mxu0 0.0
  %805 = vmatprep.subr.mxu0 0.0
  %806 = vmatpush1.msra.mxu0 0.0
  %807 = vmatprep.mubr.f32.mxu0 0.0
  %808 = vmatmul.mubr.f32.gmra.mrb[0].mxu0 %v741
  %v809 = vpop.f32.mrb[0].mxu0
  %v810 = vadd.f32 %v737, %v809
  %v811 = vpop.f32.mrb[0].mxu0
  %812 = vdwg.mxu0
  %vm813 = vcmask 1024
  %814 = vst.msk [vmem:[%s15] sm:$0x3] %vm813, %v810
  // Predicated region
  $region62: #{tpu_custom_call.1} parent=0 // pred_check
    _
  $region63: #{tpu_custom_call.1} parent=0 // pred_check_branch
    %816 = sbr.rel (0) target = $region65
  $region64: #{tpu_custom_call.1} parent=0 // pred_region
    _
  $region65: #{tpu_custom_call.1} parent=0 // pred_fallthru
    _
  // Predicated region
  $region66: #{tpu_custom_call.1} parent=0 // pred_check
    _
  $region67: #{tpu_custom_call.1} parent=0 // pred_check_branch
    %818 = sbr.rel (0) target = $region69
  $region68: #{tpu_custom_call.1} parent=0 // pred_region
    _
  $region69: #{tpu_custom_call.1} parent=0 // pred_fallthru
    _

</llo_original>
